<compile_context>
chip_gen: v6e
topology: v6e:2x2x1
jax: 0.10.0
libtpu: 0.0.40
codegen_flags: <defaults>
</compile_context>

<pallas_src>
import math

import jax
import jax.numpy as jnp
from jax.experimental import pallas as pl
from jax.experimental.pallas import tpu as pltpu


def _make_kernel(project_v_first):
    def kernel(v_ref, aw_ref, w_ref, o_ref):
        """One block of `block_b` batch elements per grid step.

        v_ref:  (T, bb, E)    value block, original seq-major layout
        aw_ref: (bb, L, T)    attention output weights block
        w_ref:  (E, E_p)      combined projection Win^T @ Wout^T (lane-padded)
        o_ref:  (L, bb, E_p)  output block, original seq-major layout
        """
        T, bb, E = v_ref.shape
        _, L, _ = aw_ref.shape
        E_p = w_ref.shape[1]
        cdt = v_ref.dtype

        # In-VMEM batch-major transpose (XLU); replaces a wrapper HBM transpose.
        v = pltpu.einshape("tbe->bte", v_ref[...])          # (bb, T, E)
        aw = aw_ref[...]                                    # (bb, L, T)
        w = w_ref[...]                                      # (E, E_p)

        if project_v_first:
            # out = AW @ (V @ Wcomb): cheaper when T < L.
            vproj = jnp.dot(v.reshape(bb * T, E), w,
                            preferred_element_type=jnp.float32)
            vproj = vproj.reshape(bb, T, E_p).astype(cdt)
            out = jnp.einsum("blt,bte->ble", aw, vproj,
                             preferred_element_type=jnp.float32)   # (bb, L, E_p)
        else:
            # out = (AW @ V) @ Wcomb: cheaper when L <= T.
            attn = jnp.einsum("blt,bte->ble", aw, v,
                              preferred_element_type=jnp.float32)  # (bb, L, E)
            attn = attn.astype(cdt)          # narrow MXU operand for bf16 inputs
            out = jnp.dot(attn.reshape(bb * L, E), w,
                          preferred_element_type=jnp.float32)
            out = out.reshape(bb, L, E_p)

        out = out.astype(o_ref.dtype)
        # In-VMEM seq-major transpose of the result (XLU), written lane-dense.
        o_ref[...] = pltpu.einshape("ble->lbe", out)        # (L, bb, E_p)

    return kernel


def simplified_attention(value, attn_output_weights, in_proj_weight,
                         out_proj_weight, key_padding_mask=None,
                         need_weights=None, block_b=None):
    """JAX wrapper mirroring SimplifiedAttention.forward.

    value:               (tgt_len, bsz, E)
    attn_output_weights: (bsz, L, tgt_len)
    returns: (attn_output (L, bsz, E), attn_output_weights if need_weights else None)
    """
    T, B, E = value.shape
    Bw, L, Tw = attn_output_weights.shape
    assert E == in_proj_weight.shape[0], "Embedding dimension mismatch."
    assert Tw == T and Bw == B

    dtype = value.dtype
    itemsize = jnp.dtype(dtype).itemsize
    f32sz = 4

    # Combined weight: ((AW@V) @ Win^T) @ Wout^T == (AW@V) @ (Win^T Wout^T).
    wcomb = jnp.dot(in_proj_weight.T, out_proj_weight.T,
                    preferred_element_type=jnp.float32).astype(dtype)

    # Lane-dense output: pad the projection OUTPUT dim (and only that) to 128.
    E_p = ((E + 127) // 128) * 128
    if E_p != E:
        wcomb = jnp.pad(wcomb, ((0, 0), (0, E_p - E)))

    # Generation-aware VMEM budget (v7x: 64 MiB physical; v5e/v6e: 128 MiB).
    try:
        vmem_cap = int(pltpu.get_tpu_info().vmem_capacity_bytes)
    except Exception:
        vmem_cap = 64 * 1024 * 1024
    vmem_budget = int(0.80 * vmem_cap)

    project_v_first = T < L

    # Per-batch-element bytes per grid step: double-buffered streamed tensors,
    # in-kernel f32 intermediates and transposed copies; wcomb counted once
    # (worst-case double buffered).
    per_b = (2 * T * E * itemsize                # value
             + 2 * L * T * itemsize              # attn weights
             + 2 * L * E_p * itemsize            # output
             + (T + L) * E_p * f32sz             # f32 matmul intermediates
             + (T + L) * max(E, E_p) * itemsize) # in-VMEM transposed copies
    fixed = 2 * E * E_p * itemsize               # wcomb

    # Batch block: multiple of 8 (sublane constraint on the second-minor dim of
    # value/output blocks) or the full batch; fit VMEM budget; keep >=2 grid
    # steps when possible so both v7x TensorCores get work.
    if block_b is None:
        if B <= 8:
            block_b = B
        else:
            fit = max(8, int((vmem_budget - fixed) // max(per_b, 1)))
            cap = (min(fit, B // 2, 64) // 8) * 8
            block_b = max(8, cap)
    else:
        block_b = min(block_b, B)
        if block_b != B and block_b % 8 != 0:
            block_b = B if B < 8 else max(8, (block_b // 8) * 8)

    grid_b = pl.cdiv(B, block_b)      # non-dividing tail handled by masking, no pad copy
    step_bytes = fixed + per_b * block_b

    vmem_limit = None
    if step_bytes > 12 * 1024 * 1024:            # below v5e's 16 MiB scoped default
        vmem_limit = min(int(step_bytes * 1.25), int(0.85 * vmem_cap))

    if project_v_first:
        flops = 2 * B * (T * E * E_p + L * T * E_p)
    else:
        flops = 2 * B * (L * T * E + L * E * E_p)
    bytes_accessed = itemsize * (B * T * E + B * L * T + E * E_p + B * L * E_p)
    cost = pl.CostEstimate(flops=flops, transcendentals=0,
                           bytes_accessed=bytes_accessed)

    # wcomb is constant across the grid: single-buffer it if supported.
    try:
        w_spec = pl.BlockSpec((E, E_p), lambda b: (0, 0),
                              pipeline_mode=pl.Buffered(1))
    except Exception:
        w_spec = pl.BlockSpec((E, E_p), lambda b: (0, 0))

    out_padded = pl.pallas_call(
        _make_kernel(project_v_first),
        out_shape=jax.ShapeDtypeStruct((L, B, E_p), dtype),
        grid_spec=pltpu.PrefetchScalarGridSpec(
            num_scalar_prefetch=0,
            grid=(grid_b,),
            in_specs=[
                pl.BlockSpec((T, block_b, E), lambda b: (0, b, 0)),   # value
                pl.BlockSpec((block_b, L, T), lambda b: (b, 0, 0)),   # attn weights
                w_spec,                                               # wcomb
            ],
            out_specs=pl.BlockSpec((L, block_b, E_p), lambda b: (0, b, 0)),
        ),
        compiler_params=pltpu.CompilerParams(
            dimension_semantics=("parallel",),
            vmem_limit_bytes=vmem_limit),
        cost_estimate=cost,
    )(value, attn_output_weights, wcomb)

    attn_output = out_padded[..., :E] if E_p != E else out_padded

    if need_weights:
        return attn_output, attn_output_weights
    return attn_output, None


def _xavier_uniform(key, shape, dtype=jnp.float32):
    fan_in, fan_out = shape[1], shape[0]
    bound = math.sqrt(6.0 / (fan_in + fan_out))
    return jax.random.uniform(key, shape, dtype, minval=-bound, maxval=bound)


def _reference(value, attn_w, win, wout):
    # Pure-JAX reference of the PyTorch forward.
    v_proj = jnp.einsum("tbe,fe->tbf", value, win)        # F.linear
    v_proj = jnp.transpose(v_proj, (1, 0, 2))             # (bsz, T, E)
    attn = jnp.einsum("blt,bte->ble", attn_w, v_proj)     # bmm
    attn = jnp.transpose(attn, (1, 0, 2))                 # (L, bsz, E)
    out = jnp.einsum("lbe,fe->lbf", attn, wout)           # F.linear
    return out


if __name__ == "__main__":
    # Small shapes consistent with the module.
    tgt_len, bsz, embed_dim = 8, 2, 32
    L = tgt_len  # attn_output_weights: (bsz, L, tgt_len)

    key = jax.random.PRNGKey(0)
    k_v, k_w, k_win, k_wout = jax.random.split(key, 4)

    value = jax.random.normal(k_v, (tgt_len, bsz, embed_dim), jnp.float32)
    attn_w = jax.random.normal(k_w, (bsz, L, tgt_len), jnp.float32)

    in_proj_weight = _xavier_uniform(k_win, (embed_dim, embed_dim))
    out_proj_weight = _xavier_uniform(k_wout, (embed_dim, embed_dim))

    out, weights = simplified_attention(value, attn_w, in_proj_weight,
                                        out_proj_weight, need_weights=None)
    out = jax.block_until_ready(out)

    ref = _reference(value, attn_w, in_proj_weight, out_proj_weight)
    assert out.shape == (tgt_len, bsz, embed_dim)
    assert weights is None
    assert jnp.allclose(out, ref, atol=1e-4, rtol=1e-4), "mismatch vs reference"

    print("KERNEL_OK")
</pallas_src>

<mosaic_0001>
module attributes {stable_mosaic.version = 11 : i64} {
  func.func @kernel(%arg0: i32, %arg1: memref<8x2x32xf32, #tpu.memory_space<vmem>>, %arg2: memref<2x8x8xf32, #tpu.memory_space<vmem>>, %arg3: memref<32x128xf32, #tpu.memory_space<vmem>>, %arg4: memref<8x2x128xf32, #tpu.memory_space<vmem>>) attributes {dimension_semantics = [#tpu.dimension_semantics<parallel>], iteration_bounds = array<i64: 1>, scalar_prefetch = 0 : i64, scratch_operands = 0 : i64, tpu.core_type = #tpu.core_type<tc>, window_params = [{transform_indices = @transform_0, window_bounds = array<i64: 8, 2, 32>}, {transform_indices = @transform_1, window_bounds = array<i64: 2, 8, 8>}, {pipeline_mode = #tpu.pipeline_mode<synchronous>, transform_indices = @transform_2, window_bounds = array<i64: 32, 128>}, {transform_indices = @transform_3, window_bounds = array<i64: 8, 2, 128>}]} {
    %c0 = arith.constant 0 : index
    %c0_0 = arith.constant 0 : index
    %c0_1 = arith.constant 0 : index
    %0 = vector.load %arg1[%c0, %c0_0, %c0_1] : memref<8x2x32xf32, #tpu.memory_space<vmem>>, vector<8x2x32xf32>
    %1 = tpu.transpose %0, [1, 0, 2] : vector<8x2x32xf32> -> vector<2x8x32xf32>
    %c0_2 = arith.constant 0 : index
    %c0_3 = arith.constant 0 : index
    %c0_4 = arith.constant 0 : index
    %2 = vector.load %arg2[%c0_2, %c0_3, %c0_4] : memref<2x8x8xf32, #tpu.memory_space<vmem>>, vector<2x8x8xf32>
    %c0_5 = arith.constant 0 : index
    %c0_6 = arith.constant 0 : index
    %3 = vector.load %arg3[%c0_5, %c0_6] : memref<32x128xf32, #tpu.memory_space<vmem>>, vector<32x128xf32>
    "tpu.trace_start"() <{level = 10 : i32, message = "blt,bte->ble"}> : () -> ()
    %cst = arith.constant dense<0.000000e+00> : vector<2x8x32xf32>
    %4 = tpu.matmul %2, %1, %cst {dimension_numbers = #tpu.dot_dimension_numbers<[2], [1], [1], [2], [0, 0, 0, 1, 1, 2], [0], [0]>} : vector<2x8x8xf32>, vector<2x8x32xf32>, vector<2x8x32xf32> -> vector<2x8x32xf32>
    "tpu.trace_stop"() : () -> ()
    %5 = vector.shape_cast %4 : vector<2x8x32xf32> to vector<16x32xf32>
    %cst_7 = arith.constant dense<0.000000e+00> : vector<16x128xf32>
    %6 = tpu.matmul %5, %3, %cst_7 {dimension_numbers = #tpu.dot_dimension_numbers<[1], [0], [0], [1], [0, 0, 1, 1], [], []>} : vector<16x32xf32>, vector<32x128xf32>, vector<16x128xf32> -> vector<16x128xf32>
    %7 = vector.shape_cast %6 : vector<16x128xf32> to vector<2x8x128xf32>
    %8 = tpu.transpose %7, [1, 0, 2] : vector<2x8x128xf32> -> vector<8x2x128xf32>
    %c0_8 = arith.constant 0 : index
    %c0_9 = arith.constant 0 : index
    %c0_10 = arith.constant 0 : index
    %9 = vector.load %arg4[%c0_8, %c0_9, %c0_10] : memref<8x2x128xf32, #tpu.memory_space<vmem>>, vector<8x2x128xf32>
    tpu.vector_store %arg4[%c0_8, %c0_9, %c0_10], %8 {strides = array<i32>} : memref<8x2x128xf32, #tpu.memory_space<vmem>>, vector<8x2x128xf32>,
    return
  }
  func.func @transform_0(%arg0: i32) -> (i32, i32, i32) {
    %c0_i32 = arith.constant 0 : i32
    %c0_i32_0 = arith.constant 0 : i32
    %c0_i32_1 = arith.constant 0 : i32
    return %c0_i32, %arg0, %c0_i32_0 : i32, i32, i32
  }
  func.func @transform_1(%arg0: i32) -> (i32, i32, i32) {
    %c0_i32 = arith.constant 0 : i32
    %c0_i32_0 = arith.constant 0 : i32
    %c0_i32_1 = arith.constant 0 : i32
    return %arg0, %c0_i32, %c0_i32_0 : i32, i32, i32
  }
  func.func @transform_2(%arg0: i32) -> (i32, i32) {
    %c0_i32 = arith.constant 0 : i32
    %c0_i32_0 = arith.constant 0 : i32
    %c0_i32_1 = arith.constant 0 : i32
    return %c0_i32, %c0_i32_0 : i32, i32
  }
  func.func @transform_3(%arg0: i32) -> (i32, i32, i32) {
    %c0_i32 = arith.constant 0 : i32
    %c0_i32_0 = arith.constant 0 : i32
    %c0_i32_1 = arith.constant 0 : i32
    return %c0_i32, %arg0, %c0_i32_0 : i32, i32, i32
  }
}

</mosaic_0001>

<llo_original>
// kernel: tpu_custom_call.1
$region0: #{tpu_custom_call.1}
  #allocation0 [shape = 'u32[]', space=smem, size = 0x4, offset = 0x4, fixed_abs, tag = 'smem constant byte address 0x4 - core index']
  #allocation1 [shape = 'u32[144,128]{1,0:T(1,128)}', space=vmem, size = 0x12000, scoped, tag = 'internal scratch']
  %s0 = inlined_call_operand.hbm [shape: f32[8,2,32], index: 0, kind: input, shape index: {}]
  %s1 = inlined_call_operand.hbm [shape: f32[2,8,8], index: 1, kind: input, shape index: {}]
  %s2 = inlined_call_operand.hbm [shape: f32[32,128], index: 2, kind: input, shape index: {}]
  %s3 = inlined_call_operand.hbm [shape: f32[8,2,128], index: 3, kind: output, shape index: {}]
  %s4 = sld [smem:[#allocation0]]
  $region34: #{tpu_custom_call.1} parent=0
    _
  %s6 = ssub.s32 1, %s4
  %s7 = scalar_select 0, %s6, %s4
  $region1: #{tpu_custom_call.1} parent=0
    #allocation2 [shape = 'u8[8192]{0}', space=vmem, size = 0x2000, scoped, tag = 'input window, operand 0, single buffered']
    #allocation3 [shape = 's32[1]{0}', space=sflag, size = 0x4, scoped, tag = 'scoped memory for tpu_custom_call.1']
    #allocation4 [shape = 's32[1]{0}', space=sflag, size = 0x4, scoped, tag = 'scoped memory for tpu_custom_call.1']
    #allocation5 [shape = 'u8[8192]{0}', space=vmem, size = 0x2000, scoped, tag = 'input window, operand 1, single buffered']
    #allocation6 [shape = 's32[1]{0}', space=sflag, size = 0x4, scoped, tag = 'scoped memory for tpu_custom_call.1']
    #allocation7 [shape = 'u8[16384]{0}', space=vmem, size = 0x4000, scoped, tag = 'input window, operand 2, single buffered']
    #allocation8 [shape = 'u8[8192]{0}', space=vmem, size = 0x2000, scoped, tag = 'output window, operand 0, single buffered']
    %8 = vsyncpa [#allocation3], 0
    %9 = vsyncpa [#allocation6], 0
    %10 = vsyncpa [#allocation4], 0
    // Predicated region
    $region2: #{tpu_custom_call.1} parent=1 // pred_check
      _
    $region3: #{tpu_custom_call.1} parent=1 // pred_check_branch
      %12 = sbr.rel (0) target = $region5
    $region4: #{tpu_custom_call.1} parent=1 // pred_region
      %s14 = ssub.s32 256, 256
      %15 = vsyncadd [#allocation3], %s14
      %s16 = sshll.u32 [#allocation2], 4
      %s17 = int_to_ptr.vmem [resolvable:$true] %s16
      %22 = dma.hbm_to_vmem [thread:$0]  %s0, 256, %s17, [#allocation3], 32, 32, 2
    $region5: #{tpu_custom_call.1} parent=1 // pred_fallthru
      _
    // Predicated region
    $region6: #{tpu_custom_call.1} parent=1 // pred_check
      _
    $region7: #{tpu_custom_call.1} parent=1 // pred_check_branch
      %24 = sbr.rel (0) target = $region9
    $region8: #{tpu_custom_call.1} parent=1 // pred_region
      %s26 = ssub.s32 256, 256
      %27 = vsyncadd [#allocation6], %s26
      %s28 = sshll.u32 [#allocation5], 4
      %s29 = int_to_ptr.vmem [resolvable:$true] %s28
      %34 = dma.hbm_to_vmem [thread:$0]  %s1, 256, %s29, [#allocation6], 128, 128, 8
    $region9: #{tpu_custom_call.1} parent=1 // pred_fallthru
      _
    // Predicated region
    $region10: #{tpu_custom_call.1} parent=1 // pred_check
      _
    $region11: #{tpu_custom_call.1} parent=1 // pred_check_branch
      %36 = sbr.rel (0) target = $region13
    $region12: #{tpu_custom_call.1} parent=1 // pred_region
      %s38 = ssub.s32 512, 512
      %39 = vsyncadd [#allocation6], %s38
      %s40 = sshll.u32 [#allocation7], 4
      %s41 = int_to_ptr.vmem [resolvable:$true] %s40
      %46 = dma.hbm_to_vmem [thread:$0]  %s2, 512, %s41, [#allocation6], 128, 128, 8
    $region13: #{tpu_custom_call.1} parent=1 // pred_fallthru
      _
    // Predicated region
    $region14: #{tpu_custom_call.1} parent=1 // pred_check
      _
    $region15: #{tpu_custom_call.1} parent=1 // pred_check_branch
      %48 = sbr.rel (0) target = $region17
    $region16: #{tpu_custom_call.1} parent=1 // pred_region
      %49 = dma.done [#allocation3], 256
    $region17: #{tpu_custom_call.1} parent=1 // pred_fallthru
      _
    // Predicated region
    $region18: #{tpu_custom_call.1} parent=1 // pred_check
      _
    $region19: #{tpu_custom_call.1} parent=1 // pred_check_branch
      %51 = sbr.rel (0) target = $region21
    $region20: #{tpu_custom_call.1} parent=1 // pred_region
      %52 = dma.done [#allocation6], 256
    $region21: #{tpu_custom_call.1} parent=1 // pred_fallthru
      _
    // Predicated region
    $region22: #{tpu_custom_call.1} parent=1 // pred_check
      _
    $region23: #{tpu_custom_call.1} parent=1 // pred_check_branch
      %54 = sbr.rel (0) target = $region25
    $region24: #{tpu_custom_call.1} parent=1 // pred_region
      %55 = dma.done [#allocation6], 512
    $region25: #{tpu_custom_call.1} parent=1 // pred_fallthru
      _
    %v56 = vld [vmem:[#allocation2] sm:$0x3]
    %v57 = vld [vmem:[#allocation2 + $0x2] sm:$0x3]
    %v58 = vld [vmem:[#allocation2 + $0x4] sm:$0x3]
    %v59 = vld [vmem:[#allocation2 + $0x6] sm:$0x3]
    %v60 = vld [vmem:[#allocation2 + $0x8] sm:$0x3]
    %v61 = vld [vmem:[#allocation2 + $0xa] sm:$0x3]
    %v62 = vld [vmem:[#allocation2 + $0xc] sm:$0x3]
    %v63 = vld [vmem:[#allocation2 + $0xe] sm:$0x3]
    %v64 = vcombine.low %v56, %v58
    %v66 = vunpack.c.l.s4 1983009808
    %v67 = vunpack.c.0.s8 %v66
    %v68 = vlaneseq
    %v69 = vshrl.u32 %v68, 7
    %v70 = vsub.s32 %v67, %v69
    %v71 = vrot.slane %v64, %v70
    %v72 = vcombine.low %v57, %v59
    %v74 = vunpack.c.l.s4 1983009808
    %v75 = vunpack.c.0.s8 %v74
    %v76 = vlaneseq
    %v77 = vshrl.u32 %v76, 7
    %v78 = vsub.s32 %v75, %v77
    %v79 = vrot.slane %v72, %v78
    %v80 = vcombine.low %v60, %v62
    %v82 = vunpack.c.l.s4 1983009808
    %v83 = vunpack.c.0.s8 %v82
    %v84 = vlaneseq
    %v85 = vshrl.u32 %v84, 7
    %v86 = vsub.s32 %v83, %v85
    %v87 = vrot.slane %v80, %v86
    %v88 = vcombine.low %v61, %v63
    %v90 = vunpack.c.l.s4 1983009808
    %v91 = vunpack.c.0.s8 %v90
    %v92 = vlaneseq
    %v93 = vshrl.u32 %v92, 7
    %v94 = vsub.s32 %v91, %v93
    %v95 = vrot.slane %v88, %v94
    %v96 = vcombine.low %v71, %v79
    %v98 = vunpack.c.l.s4 1934713408
    %v99 = vunpack.c.0.s8 %v98
    %v100 = vlaneseq
    %v101 = vshrl.u32 %v100, 7
    %v102 = vsub.s32 %v99, %v101
    %v103 = vrot.slane %v96, %v102
    %v104 = vcombine.low %v87, %v95
    %v106 = vunpack.c.l.s4 1934713408
    %v107 = vunpack.c.0.s8 %v106
    %v108 = vlaneseq
    %v109 = vshrl.u32 %v108, 7
    %v110 = vsub.s32 %v107, %v109
    %v111 = vrot.slane %v104, %v110
    %v112 = vcombine.low %v103, %v111
    %v113 = vcombine.high %v103, %v111
    %v114 = vld [vmem:[#allocation5] sm:$0xff]
    %v115 = vld [vmem:[#allocation5 + $0x8] sm:$0xff]
    %v116 = vld [vmem:[#allocation7] sm:$0xff]
    %v117 = vld [vmem:[#allocation7 + $0x8] sm:$0xff]
    %v118 = vld [vmem:[#allocation7 + $0x10] sm:$0xff]
    %v119 = vld [vmem:[#allocation7 + $0x18] sm:$0xff]
    %vm120 = vcmask 64512
    %v122 = vsel %vm120, %v114, 0
    %124 = vmatprep.subr.mxu0 0.0
    %125 = vmatpush1.msra.mxu0 0.0
    %126 = vmatprep.subr.mxu0 0.0
    %127 = vmatpush1.msra.mxu0 0.0
    %128 = vmatprep.subr.mxu0 0.0
    %129 = vmatpush1.msra.mxu0 0.0
    %130 = vmatprep.subr.mxu0 0.0
    %131 = vmatpush1.msra.mxu0 0.0
    %132 = vmatprep.subr.mxu0 0.0
    %133 = vmatpush1.msra.mxu0 0.0
    %134 = vmatprep.subr.mxu0 0.0
    %135 = vmatpush1.msra.mxu0 0.0
    %136 = vmatprep.subr.mxu0 0.0
    %137 = vmatpush1.msra.mxu0 0.0
    %138 = vmatprep.subr.mxu0 0.0
    %139 = vmatpush1.msra.mxu0 0.0
    %140 = vmatprep.subr.mxu0 0.0
    %141 = vmatpush1.msra.mxu0 0.0
    %142 = vmatprep.subr.mxu0 0.0
    %143 = vmatpush1.msra.mxu0 0.0
    %144 = vmatprep.subr.mxu0 0.0
    %145 = vmatpush1.msra.mxu0 0.0
    %146 = vmatprep.subr.mxu0 0.0
    %147 = vmatpush1.msra.mxu0 0.0
    %148 = vmatprep.subr.mxu0 0.0
    %149 = vmatpush1.msra.mxu0 0.0
    %150 = vmatprep.subr.mxu0 0.0
    %151 = vmatpush1.msra.mxu0 0.0
    %152 = vmatprep.subr.mxu0 0.0
    %153 = vmatpush1.msra.mxu0 0.0
    %154 = vmatprep.subr.mxu0 0.0
    %155 = vmatpush1.msra.mxu0 %v112
    %156 = vmatprep.subr.mxu0 0.0
    %157 = vmatpush2.msra.mxu0 0.0
    %158 = vmatprep.subr.mxu0 0.0
    %159 = vmatpush2.msra.mxu0 0.0
    %160 = vmatprep.subr.mxu0 0.0
    %161 = vmatpush2.msra.mxu0 0.0
    %162 = vmatprep.subr.mxu0 0.0
    %163 = vmatpush2.msra.mxu0 0.0
    %164 = vmatprep.subr.mxu0 0.0
    %165 = vmatpush2.msra.mxu0 0.0
    %166 = vmatprep.subr.mxu0 0.0
    %167 = vmatpush2.msra.mxu0 0.0
    %168 = vmatprep.subr.mxu0 0.0
    %169 = vmatpush2.msra.mxu0 0.0
    %170 = vmatprep.subr.mxu0 0.0
    %171 = vmatpush2.msra.mxu0 0.0
    %172 = vmatprep.subr.mxu0 0.0
    %173 = vmatpush2.msra.mxu0 0.0
    %174 = vmatprep.subr.mxu0 0.0
    %175 = vmatpush2.msra.mxu0 0.0
    %176 = vmatprep.subr.mxu0 0.0
    %177 = vmatpush2.msra.mxu0 0.0
    %178 = vmatprep.subr.mxu0 0.0
    %179 = vmatpush2.msra.mxu0 0.0
    %180 = vmatprep.subr.mxu0 0.0
    %181 = vmatpush2.msra.mxu0 0.0
    %182 = vmatprep.subr.mxu0 0.0
    %183 = vmatpush2.msra.mxu0 0.0
    %184 = vmatprep.subr.mxu0 0.0
    %185 = vmatpush2.msra.mxu0 0.0
    %186 = vmatprep.subr.mxu0 0.0
    %187 = vmatpush2.msra.mxu0 0.0
    %188 = vmatprep.mubr.f32.mxu0 0.0
    %189 = vmatmul.mubr.f32.gmra.mxu0 %v122
    %v190 = vpop.f32.mrf.mxu0
    %v191 = vadd.f32 0.0, %v190
    %v192 = vpop.f32.mrf.mxu0
    %193 = vdwg.mxu0
    %v195 = vsel %vm120, %v115, 0
    %197 = vmatprep.subr.mxu0 0.0
    %198 = vmatpush1.msra.mxu0 0.0
    %199 = vmatprep.subr.mxu0 0.0
    %200 = vmatpush1.msra.mxu0 0.0
    %201 = vmatprep.subr.mxu0 0.0
    %202 = vmatpush1.msra.mxu0 0.0
    %203 = vmatprep.subr.mxu0 0.0
    %204 = vmatpush1.msra.mxu0 0.0
    %205 = vmatprep.subr.mxu0 0.0
    %206 = vmatpush1.msra.mxu0 0.0
    %207 = vmatprep.subr.mxu0 0.0
    %208 = vmatpush1.msra.mxu0 0.0
    %209 = vmatprep.subr.mxu0 0.0
    %210 = vmatpush1.msra.mxu0 0.0
    %211 = vmatprep.subr.mxu0 0.0
    %212 = vmatpush1.msra.mxu0 0.0
    %213 = vmatprep.subr.mxu0 0.0
    %214 = vmatpush1.msra.mxu0 0.0
    %215 = vmatprep.subr.mxu0 0.0
    %216 = vmatpush1.msra.mxu0 0.0
    %217 = vmatprep.subr.mxu0 0.0
    %218 = vmatpush1.msra.mxu0 0.0
    %219 = vmatprep.subr.mxu0 0.0
    %220 = vmatpush1.msra.mxu0 0.0
    %221 = vmatprep.subr.mxu0 0.0
    %222 = vmatpush1.msra.mxu0 0.0
    %223 = vmatprep.subr.mxu0 0.0
    %224 = vmatpush1.msra.mxu0 0.0
    %225 = vmatprep.subr.mxu0 0.0
    %226 = vmatpush1.msra.mxu0 0.0
    %227 = vmatprep.subr.mxu0 0.0
    %228 = vmatpush1.msra.mxu0 %v113
    %229 = vmatprep.subr.mxu0 0.0
    %230 = vmatpush2.msra.mxu0 0.0
    %231 = vmatprep.subr.mxu0 0.0
    %232 = vmatpush2.msra.mxu0 0.0
    %233 = vmatprep.subr.mxu0 0.0
    %234 = vmatpush2.msra.mxu0 0.0
    %235 = vmatprep.subr.mxu0 0.0
    %236 = vmatpush2.msra.mxu0 0.0
    %237 = vmatprep.subr.mxu0 0.0
    %238 = vmatpush2.msra.mxu0 0.0
    %239 = vmatprep.subr.mxu0 0.0
    %240 = vmatpush2.msra.mxu0 0.0
    %241 = vmatprep.subr.mxu0 0.0
    %242 = vmatpush2.msra.mxu0 0.0
    %243 = vmatprep.subr.mxu0 0.0
    %244 = vmatpush2.msra.mxu0 0.0
    %245 = vmatprep.subr.mxu0 0.0
    %246 = vmatpush2.msra.mxu0 0.0
    %247 = vmatprep.subr.mxu0 0.0
    %248 = vmatpush2.msra.mxu0 0.0
    %249 = vmatprep.subr.mxu0 0.0
    %250 = vmatpush2.msra.mxu0 0.0
    %251 = vmatprep.subr.mxu0 0.0
    %252 = vmatpush2.msra.mxu0 0.0
    %253 = vmatprep.subr.mxu0 0.0
    %254 = vmatpush2.msra.mxu0 0.0
    %255 = vmatprep.subr.mxu0 0.0
    %256 = vmatpush2.msra.mxu0 0.0
    %257 = vmatprep.subr.mxu0 0.0
    %258 = vmatpush2.msra.mxu0 0.0
    %259 = vmatprep.subr.mxu0 0.0
    %260 = vmatpush2.msra.mxu0 0.0
    %261 = vmatprep.mubr.f32.mxu0 0.0
    %262 = vmatmul.mubr.f32.gmra.mxu0 %v195
    %v263 = vpop.f32.mrf.mxu0
    %v264 = vadd.f32 0.0, %v263
    %v265 = vpop.f32.mrf.mxu0
    %266 = vdwg.mxu0
    %vm267 = vcmask 261120
    %v269 = vsel %vm267, %v191, 0
    %v272 = vsel %vm267, %v264, 0
    %274 = vmatprep.subr.mxu0 0.0
    %275 = vmatpush1.msra.mxu0 0.0
    %276 = vmatprep.subr.mxu0 0.0
    %277 = vmatpush1.msra.mxu0 0.0
    %278 = vmatprep.subr.mxu0 0.0
    %279 = vmatpush1.msra.mxu0 0.0
    %280 = vmatprep.subr.mxu0 0.0
    %281 = vmatpush1.msra.mxu0 0.0
    %282 = vmatprep.subr.mxu0 0.0
    %283 = vmatpush1.msra.mxu0 0.0
    %284 = vmatprep.subr.mxu0 0.0
    %285 = vmatpush1.msra.mxu0 0.0
    %286 = vmatprep.subr.mxu0 0.0
    %287 = vmatpush1.msra.mxu0 0.0
    %288 = vmatprep.subr.mxu0 0.0
    %289 = vmatpush1.msra.mxu0 0.0
    %290 = vmatprep.subr.mxu0 0.0
    %291 = vmatpush1.msra.mxu0 0.0
    %292 = vmatprep.subr.mxu0 0.0
    %293 = vmatpush1.msra.mxu0 0.0
    %294 = vmatprep.subr.mxu0 0.0
    %295 = vmatpush1.msra.mxu0 0.0
    %296 = vmatprep.subr.mxu0 0.0
    %297 = vmatpush1.msra.mxu0 0.0
    %298 = vmatprep.subr.mxu0 0.0
    %299 = vmatpush1.msra.mxu0 %v119
    %300 = vmatprep.subr.mxu0 0.0
    %301 = vmatpush1.msra.mxu0 %v118
    %302 = vmatprep.subr.mxu0 0.0
    %303 = vmatpush1.msra.mxu0 %v117
    %304 = vmatprep.subr.mxu0 0.0
    %305 = vmatpush1.msra.mxu0 %v116
    %306 = vmatprep.subr.mxu0 0.0
    %307 = vmatpush2.msra.mxu0 0.0
    %308 = vmatprep.subr.mxu0 0.0
    %309 = vmatpush2.msra.mxu0 0.0
    %310 = vmatprep.subr.mxu0 0.0
    %311 = vmatpush2.msra.mxu0 0.0
    %312 = vmatprep.subr.mxu0 0.0
    %313 = vmatpush2.msra.mxu0 0.0
    %314 = vmatprep.subr.mxu0 0.0
    %315 = vmatpush2.msra.mxu0 0.0
    %316 = vmatprep.subr.mxu0 0.0
    %317 = vmatpush2.msra.mxu0 0.0
    %318 = vmatprep.subr.mxu0 0.0
    %319 = vmatpush2.msra.mxu0 0.0
    %320 = vmatprep.subr.mxu0 0.0
    %321 = vmatpush2.msra.mxu0 0.0
    %322 = vmatprep.subr.mxu0 0.0
    %323 = vmatpush2.msra.mxu0 0.0
    %324 = vmatprep.subr.mxu0 0.0
    %325 = vmatpush2.msra.mxu0 0.0
    %326 = vmatprep.subr.mxu0 0.0
    %327 = vmatpush2.msra.mxu0 0.0
    %328 = vmatprep.subr.mxu0 0.0
    %329 = vmatpush2.msra.mxu0 0.0
    %330 = vmatprep.subr.mxu0 0.0
    %331 = vmatpush2.msra.mxu0 0.0
    %332 = vmatprep.subr.mxu0 0.0
    %333 = vmatpush2.msra.mxu0 0.0
    %334 = vmatprep.subr.mxu0 0.0
    %335 = vmatpush2.msra.mxu0 0.0
    %336 = vmatprep.subr.mxu0 0.0
    %337 = vmatpush2.msra.mxu0 0.0
    %338 = vmatprep.mubr.f32.mxu0 0.0
    %339 = vmatmul.mubr.f32.gmra.mxu0 %v269
    %v340 = vpop.f32.mrf.mxu0
    %v341 = vadd.f32 0.0, %v340
    %v342 = vpop.f32.mrf.mxu0
    %343 = vmatprep.mubr.f32.mxu0 0.0
    %344 = vmatmul.mubr.f32.gmra.mxu0 %v272
    %v345 = vpop.f32.mrf.mxu0
    %v346 = vadd.f32 0.0, %v345
    %v347 = vpop.f32.mrf.mxu0
    %348 = vdwg.mxu0
    %v349 = vcombine.high %v341, 0.0
    %v351 = vunpack.c.l.s4 1983009808
    %v352 = vunpack.c.0.s8 %v351
    %v353 = vlaneseq
    %v354 = vshrl.u32 %v353, 7
    %v355 = vsub.s32 %v352, %v354
    %v356 = vrot.slane %v341, %v355
    %v358 = vunpack.c.l.s4 1983009808
    %v359 = vunpack.c.0.s8 %v358
    %v360 = vlaneseq
    %v361 = vshrl.u32 %v360, 7
    %v362 = vsub.s32 %v359, %v361
    %v363 = vrot.slane %v349, %v362
    %v364 = vcombine.high %v346, 0.0
    %v366 = vunpack.c.l.s4 1983009808
    %v367 = vunpack.c.0.s8 %v366
    %v368 = vlaneseq
    %v369 = vshrl.u32 %v368, 7
    %v370 = vsub.s32 %v367, %v369
    %v371 = vrot.slane %v346, %v370
    %v373 = vunpack.c.l.s4 1983009808
    %v374 = vunpack.c.0.s8 %v373
    %v375 = vlaneseq
    %v376 = vshrl.u32 %v375, 7
    %v377 = vsub.s32 %v374, %v376
    %v378 = vrot.slane %v364, %v377
    %v379 = vcombine.low %v356, %v371
    %v380 = vcombine.high %v356, %v371
    %v382 = vunpack.c.l.s4 1934713408
    %v383 = vunpack.c.0.s8 %v382
    %v384 = vlaneseq
    %v385 = vshrl.u32 %v384, 7
    %v386 = vsub.s32 %v383, %v385
    %v387 = vrot.slane %v379, %v386
    %v389 = vunpack.c.l.s4 1934713408
    %v390 = vunpack.c.0.s8 %v389
    %v391 = vlaneseq
    %v392 = vshrl.u32 %v391, 7
    %v393 = vsub.s32 %v390, %v392
    %v394 = vrot.slane %v380, %v393
    %v395 = vcombine.low %v363, %v378
    %v396 = vcombine.high %v363, %v378
    %v398 = vunpack.c.l.s4 1934713408
    %v399 = vunpack.c.0.s8 %v398
    %v400 = vlaneseq
    %v401 = vshrl.u32 %v400, 7
    %v402 = vsub.s32 %v399, %v401
    %v403 = vrot.slane %v395, %v402
    %v405 = vunpack.c.l.s4 1934713408
    %v406 = vunpack.c.0.s8 %v405
    %v407 = vlaneseq
    %v408 = vshrl.u32 %v407, 7
    %v409 = vsub.s32 %v406, %v408
    %v410 = vrot.slane %v396, %v409
    %v411 = vcombine.high %v387, 0.0
    %v412 = vcombine.high %v394, 0.0
    %v413 = vcombine.high %v403, 0.0
    %v414 = vcombine.high %v410, 0.0
    %415 = vst [vmem:[#allocation8] sm:$0x3] %v387
    %416 = vst [vmem:[#allocation8 + $0x2] sm:$0x3] %v411
    %417 = vst [vmem:[#allocation8 + $0x4] sm:$0x3] %v394
    %418 = vst [vmem:[#allocation8 + $0x6] sm:$0x3] %v412
    %419 = vst [vmem:[#allocation8 + $0x8] sm:$0x3] %v403
    %420 = vst [vmem:[#allocation8 + $0xa] sm:$0x3] %v413
    %421 = vst [vmem:[#allocation8 + $0xc] sm:$0x3] %v410
    %422 = vst [vmem:[#allocation8 + $0xe] sm:$0x3] %v414
    // Predicated region
    $region26: #{tpu_custom_call.1} parent=1 // pred_check
      _
    $region27: #{tpu_custom_call.1} parent=1 // pred_check_branch
      %424 = sbr.rel (0) target = $region29
    $region28: #{tpu_custom_call.1} parent=1 // pred_region
      %s426 = ssub.s32 256, 256
      %427 = vsyncadd [#allocation4], %s426
      %s428 = sshll.u32 [#allocation8], 4
      %s429 = int_to_ptr.vmem [resolvable:$true] %s428
      %434 = dma.vmem_to_hbm [thread:$0]  %s429, 256, %s3, [#allocation4], 32, 32, 2
    $region29: #{tpu_custom_call.1} parent=1 // pred_fallthru
      _
    // Predicated region
    $region30: #{tpu_custom_call.1} parent=1 // pred_check
      _
    $region31: #{tpu_custom_call.1} parent=1 // pred_check_branch
      %436 = sbr.rel (0) target = $region33
    $region32: #{tpu_custom_call.1} parent=1 // pred_region
      %437 = dma.done [#allocation4], 256
    $region33: #{tpu_custom_call.1} parent=1 // pred_fallthru
      _
    %438 = vsyncpa [#allocation3], 1
    %439 = vsyncpa [#allocation6], 1
    %440 = vsyncpa [#allocation4], 1

</llo_original>
